<compile_context>
chip_gen: v6e
topology: v6e:2x2x1
jax: 0.10.0
libtpu: 0.0.40
codegen_flags: <defaults>
</compile_context>

<pallas_src>
import functools

import jax
import jax.numpy as jnp
import numpy as np
from jax.experimental import pallas as pl
from jax.experimental.pallas import tpu as pltpu

EPS = 1e-5          # nn.BatchNorm2d default eps
LANE = 128          # lane width: pad channel-like dims to multiples of this

# Generation-aware VMEM budget (~3/4 of physical: 48 MiB on v7x, 96 MiB on
# v5e/v6e) and fallback-matmul tile size.
try:
    _VMEM_PHYS = int(pltpu.get_tpu_info().vmem_capacity_bytes)
except Exception:
    _VMEM_PHYS = 64 * 1024 * 1024
VMEM_LIMIT = max(32 * 1024 * 1024, (_VMEM_PHYS * 3) // 4)
TM_BASE = 1024 if VMEM_LIMIT > 64 * 1024 * 1024 else 512


def _round_up(x, m):
    return (x + m - 1) // m * m


def _pad_channels(a, cp):
    return jnp.pad(a, ((0, 0), (0, 0), (0, 0), (0, cp - a.shape[-1])))


def _pad_vec(v, cp):
    return jnp.pad(v.astype(jnp.float32).reshape(1, -1),
                   ((0, 0), (0, cp - v.shape[0])))


def _pad_w3x3(w, kin_p, cout_p):
    _, _, cin, cout = w.shape
    w9 = w.reshape(9, cin, cout)                       # tap-major (kh*3+kw, Cin, Cout)
    w9 = jnp.pad(w9, ((0, 0), (0, kin_p - cin), (0, cout_p - cout)))
    return w9.astype(jnp.bfloat16)


# ---------------------------------------------------------------------------
# Fused stride-1 3x3 conv kernel:
#   optional folded input BN+ReLU  ->  in-VMEM zero-pad ring  ->  9-tap MXU
#   accumulation  ->  bf16 store + f32 per-channel sum/sumsq (BN stats),
#   plus an optional fused 1x1-skip matmul with its own stats.
# Grid = (nc "parallel", N // nc "arbitrary"); stats rows are per-core partials.
# ---------------------------------------------------------------------------
def _fused_conv3x3_kernel(*refs, bn_in, with_skip):
    idx = 0
    x_ref = refs[idx]; idx += 1                       # (1, H, W, Cin_p)   bf16
    w_ref = refs[idx]; idx += 1                       # (9, Cin_p, Cout_p) bf16
    if bn_in:
        sc_ref, sh_ref = refs[idx], refs[idx + 1]; idx += 2   # (1, Cin_p) f32
    if with_skip:
        xs_ref, ws_ref = refs[idx], refs[idx + 1]; idx += 2   # (1,H,W,Cs_p), (Cs_p,Cout_p)
    y_ref = refs[idx]; idx += 1                       # (1, H, W, Cout_p)  bf16
    if with_skip:
        ysk_ref = refs[idx]; idx += 1                 # (1, H, W, Cout_p)  bf16
    sum_ref, sq_ref = refs[idx], refs[idx + 1]; idx += 2      # (1, 1, Cout_p) f32
    if with_skip:
        sums_ref, sqs_ref = refs[idx], refs[idx + 1]; idx += 2
    pad_ref = refs[idx]                               # (H+2, W+2, Cin_p) bf16 scratch

    _, H, W, Cin_p = x_ref.shape
    Cout_p = y_ref.shape[-1]

    @pl.when(pl.program_id(1) == 0)
    def _():
        sum_ref[...] = jnp.zeros_like(sum_ref)
        sq_ref[...] = jnp.zeros_like(sq_ref)
        if with_skip:
            sums_ref[...] = jnp.zeros_like(sums_ref)
            sqs_ref[...] = jnp.zeros_like(sqs_ref)

    a = x_ref[0]
    if bn_in:
        # Previous BN+ReLU folded into the conv load path (VPU work hidden
        # under the MXU); f32 arithmetic, bf16 only at the MXU boundary.
        a = jnp.maximum(a.astype(jnp.float32) * sc_ref[...] + sh_ref[...], 0.0)
    a = a.astype(jnp.bfloat16)

    # Zero-pad the 1-pixel ring entirely in VMEM (padding=1 of the 3x3 conv).
    pad_ref[...] = jnp.zeros_like(pad_ref)
    pad_ref[1:H + 1, 1:W + 1, :] = a

    acc = jnp.zeros((H * W, Cout_p), jnp.float32)
    for t in range(9):                                 # static unroll: 9 MXU taps
        kh, kw = divmod(t, 3)
        xt = pad_ref[kh:kh + H, kw:kw + W, :].reshape(H * W, Cin_p)
        acc = acc + jnp.dot(xt, w_ref[t], preferred_element_type=jnp.float32)

    sum_ref[0] += jnp.sum(acc, axis=0, keepdims=True)
    sq_ref[0] += jnp.sum(acc * acc, axis=0, keepdims=True)
    y_ref[0] = acc.reshape(H, W, Cout_p).astype(y_ref.dtype)

    if with_skip:
        # Tiny 1x1-skip matmul (K = Cin) rides in the MXU slack of the conv.
        xs = xs_ref[0].reshape(H * W, xs_ref.shape[-1])
        sk = jnp.dot(xs, ws_ref[...], preferred_element_type=jnp.float32)
        sums_ref[0] += jnp.sum(sk, axis=0, keepdims=True)
        sqs_ref[0] += jnp.sum(sk * sk, axis=0, keepdims=True)
        ysk_ref[0] = sk.reshape(H, W, Cout_p).astype(ysk_ref.dtype)


def conv3x3_s1(x, w, *, bn_in=None, skip=None, nc=1):
    """x: (N,H,W,Cin_p) bf16, w: (9,Cin_p,Cout_p) bf16.
    Returns y [, y_skip], sum, sq [, sum_skip, sq_skip]; stats are (nc,1,Cout_p)."""
    N, H, W, Cin_p = x.shape
    Cout_p = w.shape[-1]
    assert N % nc == 0
    steps = N // nc

    img_map = lambda c, n: (c * steps + n, 0, 0, 0)
    x_spec = pl.BlockSpec((1, H, W, Cin_p), img_map)
    w_spec = pl.BlockSpec(w.shape, lambda c, n: (0, 0, 0))
    vec_spec = pl.BlockSpec((1, Cin_p), lambda c, n: (0, 0))
    y_spec = pl.BlockSpec((1, H, W, Cout_p), img_map)
    stat_spec = pl.BlockSpec((1, 1, Cout_p), lambda c, n: (c, 0, 0))
    stat_shape = jax.ShapeDtypeStruct((nc, 1, Cout_p), jnp.float32)

    in_specs, args = [x_spec, w_spec], [x, w]
    if bn_in is not None:
        in_specs += [vec_spec, vec_spec]
        args += list(bn_in)
    if skip is not None:
        xs, ws = skip
        in_specs += [pl.BlockSpec((1, H, W, xs.shape[-1]), img_map),
                     pl.BlockSpec(ws.shape, lambda c, n: (0, 0))]
        args += [xs, ws]

    out_shapes = [jax.ShapeDtypeStruct((N, H, W, Cout_p), jnp.bfloat16)]
    out_specs = [y_spec]
    if skip is not None:
        out_shapes += [jax.ShapeDtypeStruct((N, H, W, Cout_p), jnp.bfloat16)]
        out_specs += [y_spec]
    out_shapes += [stat_shape, stat_shape]
    out_specs += [stat_spec, stat_spec]
    if skip is not None:
        out_shapes += [stat_shape, stat_shape]
        out_specs += [stat_spec, stat_spec]

    kernel = functools.partial(_fused_conv3x3_kernel,
                               bn_in=bn_in is not None,
                               with_skip=skip is not None)
    return pl.pallas_call(
        kernel,
        out_shape=tuple(out_shapes),
        grid=(nc, steps),
        in_specs=in_specs,
        out_specs=tuple(out_specs),
        scratch_shapes=[pltpu.VMEM((H + 2, W + 2, Cin_p), jnp.bfloat16)],
        compiler_params=pltpu.CompilerParams(
            dimension_semantics=("parallel", "arbitrary"),
            vmem_limit_bytes=VMEM_LIMIT),
    )(*args)


# ---------------------------------------------------------------------------
# Fallback matmul + stats (im2col patches) -- only used for the stride>1 conv1.
# ---------------------------------------------------------------------------
def _mm_stats_kernel(p_ref, w_ref, y_ref, sum_ref, sq_ref):
    @pl.when(pl.program_id(1) == 0)
    def _():
        sum_ref[...] = jnp.zeros_like(sum_ref)
        sq_ref[...] = jnp.zeros_like(sq_ref)
    y = jnp.dot(p_ref[...], w_ref[...], preferred_element_type=jnp.float32)
    y_ref[...] = y.astype(y_ref.dtype)                 # bf16 intermediate store
    # Padded M rows are exact zeros (zero patches @ W) -> no stats contribution.
    sum_ref[0] += jnp.sum(y, axis=0, keepdims=True)
    sq_ref[0] += jnp.sum(y * y, axis=0, keepdims=True)


def mm_stats(patches, w, *, tm, nc):
    Mp, Kp = patches.shape
    Cp = w.shape[-1]
    steps = Mp // (nc * tm)
    row_map = lambda c, i: (c * steps + i, 0)
    return pl.pallas_call(
        _mm_stats_kernel,
        out_shape=(jax.ShapeDtypeStruct((Mp, Cp), jnp.bfloat16),
                   jax.ShapeDtypeStruct((nc, 1, Cp), jnp.float32),
                   jax.ShapeDtypeStruct((nc, 1, Cp), jnp.float32)),
        grid=(nc, steps),
        in_specs=[pl.BlockSpec((tm, Kp), row_map),
                  pl.BlockSpec((Kp, Cp), lambda c, i: (0, 0))],
        out_specs=(pl.BlockSpec((tm, Cp), row_map),
                   pl.BlockSpec((1, 1, Cp), lambda c, i: (c, 0, 0)),
                   pl.BlockSpec((1, 1, Cp), lambda c, i: (c, 0, 0))),
        compiler_params=pltpu.CompilerParams(
            dimension_semantics=("parallel", "arbitrary"),
            vmem_limit_bytes=VMEM_LIMIT),
    )(patches, w)


# ---------------------------------------------------------------------------
# Final epilogue kernels: bn2 + residual + ReLU, f32 arithmetic, bf16 stores.
# ---------------------------------------------------------------------------
def _bn_add_bn_relu_kernel(y_ref, sc_ref, sh_ref, ys_ref, scs_ref, shs_ref, o_ref):
    out = (y_ref[0].astype(jnp.float32) * sc_ref[...] + sh_ref[...]
           + ys_ref[0].astype(jnp.float32) * scs_ref[...] + shs_ref[...])
    o_ref[0] = jnp.maximum(out, 0.0).astype(o_ref.dtype)


def _bn_add_id_relu_kernel(y_ref, sc_ref, sh_ref, id_ref, o_ref):
    out = (y_ref[0].astype(jnp.float32) * sc_ref[...] + sh_ref[...]
           + id_ref[0].astype(jnp.float32))
    o_ref[0] = jnp.maximum(out, 0.0).astype(o_ref.dtype)


def _epilogue_call(kernel, args, tiled):
    """args[i] is (N,Ho,Wo,Cp) if tiled[i] else a (1,Cp) VMEM-resident vector."""
    N, Ho, Wo, Cp = args[0].shape
    tile_spec = pl.BlockSpec((1, Ho, Wo, Cp), lambda n: (n, 0, 0, 0))
    vec_spec = pl.BlockSpec((1, Cp), lambda n: (0, 0))
    return pl.pallas_call(
        kernel,
        out_shape=jax.ShapeDtypeStruct((N, Ho, Wo, Cp), jnp.bfloat16),
        grid=(N,),
        in_specs=[tile_spec if t else vec_spec for t in tiled],
        out_specs=tile_spec,
        compiler_params=pltpu.CompilerParams(
            dimension_semantics=("parallel",),
            vmem_limit_bytes=VMEM_LIMIT),
    )(*args)


def _bn_scale_shift(s_sum, s_sq, gamma_p, beta_p, count):
    """Combine per-core partial stats and fold BN into per-channel scale/shift.
    Note: naive E[y^2]-mean^2 in f32; fine at this tolerance (see review)."""
    s = jnp.sum(s_sum, axis=0)                         # (1, Cp)
    q = jnp.sum(s_sq, axis=0)
    mean = s / count
    var = jnp.maximum(q / count - mean * mean, 0.0)
    inv = jax.lax.rsqrt(var + EPS)
    scale = gamma_p * inv
    shift = beta_p - mean * scale
    return scale, shift


# ---------------------------------------------------------------------------
# Plain-JAX glue: im2col patch extraction (3x3, pad=1) -- stride>1 fallback only
# ---------------------------------------------------------------------------
def im2col_3x3(x, stride):
    N, H, W, C = x.shape
    xp = jnp.pad(x, ((0, 0), (1, 1), (1, 1), (0, 0)))
    Ho = (H + 2 - 3) // stride + 1
    Wo = (W + 2 - 3) // stride + 1
    cols = [xp[:, kh:kh + stride * (Ho - 1) + 1:stride,
               kw:kw + stride * (Wo - 1) + 1:stride, :]
            for kh in range(3) for kw in range(3)]
    patches = jnp.concatenate(cols, axis=-1).reshape(N * Ho * Wo, 9 * C)
    return patches, Ho, Wo


# ---------------------------------------------------------------------------
# BasicBlock parameters (deterministic init; shapes per the PyTorch __init__)
# ---------------------------------------------------------------------------
def init_params(key, inplanes, planes, stride):
    k1, k2, k3, k4 = jax.random.split(key, 4)
    w1 = jax.random.normal(k1, (3, 3, inplanes, planes), jnp.float32) / np.sqrt(9 * inplanes)
    w2 = jax.random.normal(k2, (3, 3, planes, planes), jnp.float32) / np.sqrt(9 * planes)
    g = 1.0 + 0.1 * jax.random.normal(k4, (6, planes), jnp.float32)
    params = dict(w1=w1, g1=g[0], b1=0.1 * g[1], w2=w2, g2=g[2], b2=0.1 * g[3])
    if stride != 1 or inplanes != planes:              # expansion == 1
        ws = jax.random.normal(k3, (1, 1, inplanes, planes), jnp.float32) / np.sqrt(inplanes)
        params.update(ws=ws, gs=g[4], bs=0.1 * g[5])
    return params


# ---------------------------------------------------------------------------
# BasicBlock forward using the Pallas kernels
# ---------------------------------------------------------------------------
def basic_block_forward(x, params, stride):
    N, H, W, Cin = x.shape
    planes = params["w1"].shape[-1]
    Cp = _round_up(planes, LANE)
    Cin_p = _round_up(Cin, LANE)
    nc = 2 if N % 2 == 0 else 1                        # v7x megacore split (no-op on 1 TC)

    # bf16 at all MXU boundaries and for all stored intermediates/residuals;
    # this deviates from the f32 reference by bf16 rounding (loose tolerance).
    x_bf = x.astype(jnp.bfloat16)

    g1 = _pad_vec(params["g1"], Cp); b1 = _pad_vec(params["b1"], Cp)
    g2 = _pad_vec(params["g2"], Cp); b2 = _pad_vec(params["b2"], Cp)

    # ---- conv1 + bn1 batch statistics ------------------------------------
    if stride == 1:
        x_cp = _pad_channels(x_bf, Cin_p)
        w1 = _pad_w3x3(params["w1"], Cin_p, Cp)
        y1, s1, q1 = conv3x3_s1(x_cp, w1, nc=nc)       # in-kernel 9-tap conv
        Ho, Wo = H, W
    else:
        # TODO(synk): strided 3x3 conv still uses an HBM im2col fallback.
        p1, Ho, Wo = im2col_3x3(x_bf, stride)
        M1 = N * Ho * Wo
        K1 = 9 * Cin
        K1p = _round_up(K1, LANE)                      # lane-dense K
        tm = min(TM_BASE, _round_up(pl.cdiv(M1, nc), 8))
        Mp = _round_up(M1, nc * tm)
        p1 = jnp.pad(p1, ((0, Mp - M1), (0, K1p - K1)))
        w1 = jnp.pad(params["w1"].reshape(K1, planes),
                     ((0, K1p - K1), (0, Cp - planes))).astype(jnp.bfloat16)
        y1f, s1, q1 = mm_stats(p1, w1, tm=tm, nc=nc)
        y1 = y1f[:M1].reshape(N, Ho, Wo, Cp)
    M = N * Ho * Wo
    sc1, sh1 = _bn_scale_shift(s1, q1, g1, b1, M)

    # ---- conv2 (+ fused 1x1 skip) with folded bn1+ReLU on the load path ----
    w2 = _pad_w3x3(params["w2"], Cp, Cp)
    if "ws" in params:
        xs = _pad_channels(x_bf[:, ::stride, ::stride, :], Cin_p)   # bf16 residual input
        ws = jnp.pad(params["ws"].reshape(Cin, planes),
                     ((0, Cin_p - Cin), (0, Cp - planes))).astype(jnp.bfloat16)
        gs = _pad_vec(params["gs"], Cp); bs = _pad_vec(params["bs"], Cp)
        y2, ysk, s2, q2, ss, qs = conv3x3_s1(y1, w2, bn_in=(sc1, sh1),
                                             skip=(xs, ws), nc=nc)
        sc2, sh2 = _bn_scale_shift(s2, q2, g2, b2, M)
        scs, shs = _bn_scale_shift(ss, qs, gs, bs, M)
        out = _epilogue_call(_bn_add_bn_relu_kernel,
                             [y2, sc2, sh2, ysk, scs, shs],
                             [True, False, False, True, False, False])
    else:
        y2, s2, q2 = conv3x3_s1(y1, w2, bn_in=(sc1, sh1), nc=nc)
        sc2, sh2 = _bn_scale_shift(s2, q2, g2, b2, M)
        ident = _pad_channels(x_bf, Cp)                # Cin == planes on this path
        out = _epilogue_call(_bn_add_id_relu_kernel,
                             [y2, sc2, sh2, ident],
                             [True, False, False, True])

    return out[:, :, :, :planes]                        # bf16 (N, Ho, Wo, planes)


# ---------------------------------------------------------------------------
# Pure-JAX reference (for correctness check)
# ---------------------------------------------------------------------------
def ref_forward(x, params, stride):
    def conv(y, w, s, pad):
        return jax.lax.conv_general_dilated(
            y, w, (s, s), pad, dimension_numbers=("NHWC", "HWIO", "NHWC"))

    def bn(y, g, b):
        m = jnp.mean(y, axis=(0, 1, 2), keepdims=True)
        v = jnp.mean(jnp.square(y - m), axis=(0, 1, 2), keepdims=True)
        return (y - m) * jax.lax.rsqrt(v + EPS) * g.reshape(1, 1, 1, -1) + b.reshape(1, 1, 1, -1)

    out = jax.nn.relu(bn(conv(x, params["w1"], stride, ((1, 1), (1, 1))),
                         params["g1"], params["b1"]))
    out = bn(conv(out, params["w2"], 1, ((1, 1), (1, 1))), params["g2"], params["b2"])
    if "ws" in params:
        identity = bn(conv(x, params["ws"], stride, "VALID"), params["gs"], params["bs"])
    else:
        identity = x
    return jax.nn.relu(out + identity)


if __name__ == "__main__":
    key = jax.random.PRNGKey(0)
    kx, kp = jax.random.split(key)

    # Downsample path (stride=2, channel change): im2col fallback for conv1,
    # fused conv2 + 1x1-skip + stats, BN-skip epilogue.
    inplanes, planes, stride = 4, 8, 2
    x_nchw = jax.random.normal(kx, (2, inplanes, 16, 16), jnp.float32)  # PyTorch NCHW
    x = jnp.transpose(x_nchw, (0, 2, 3, 1))                             # -> NHWC
    params = init_params(kp, inplanes, planes, stride)

    out = jax.block_until_ready(basic_block_forward(x, params, stride))
    ref = ref_forward(x, params, stride)
    # bf16 intermediate/output storage -> slightly looser tolerance than pure f32.
    np.testing.assert_allclose(np.asarray(out.astype(jnp.float32)), np.asarray(ref),
                               atol=6e-2, rtol=6e-2)

    # Identity path (stride=1, same channels): fully in-kernel convs, raw
    # bf16 identity residual in the epilogue.
    params_id = init_params(kp, planes, planes, 1)
    x2 = jax.random.normal(kx, (2, 16, 16, planes), jnp.float32)
    out2 = jax.block_until_ready(basic_block_forward(x2, params_id, 1))
    ref2 = ref_forward(x2, params_id, 1)
    np.testing.assert_allclose(np.asarray(out2.astype(jnp.float32)), np.asarray(ref2),
                               atol=6e-2, rtol=6e-2)

    print("KERNEL_OK")
</pallas_src>

<mosaic_0001>
module attributes {stable_mosaic.version = 11 : i64} {
  func.func @_mm_stats_kernel(%arg0: i32, %arg1: i32, %arg2: memref<64x128xbf16, #tpu.memory_space<vmem>>, %arg3: memref<128x128xbf16, #tpu.memory_space<vmem>>, %arg4: memref<64x128xbf16, #tpu.memory_space<vmem>>, %arg5: memref<1x1x128xf32, #tpu.memory_space<vmem>>, %arg6: memref<1x1x128xf32, #tpu.memory_space<vmem>>) attributes {dimension_semantics = [#tpu.dimension_semantics<parallel>, #tpu.dimension_semantics<arbitrary>], iteration_bounds = array<i64: 2, 1>, scalar_prefetch = 0 : i64, scratch_operands = 0 : i64, tpu.core_type = #tpu.core_type<tc>, window_params = [{transform_indices = @transform_0, window_bounds = array<i64: 64, 128>}, {pipeline_mode = #tpu.pipeline_mode<synchronous>, transform_indices = @transform_1, window_bounds = array<i64: 128, 128>}, {transform_indices = @transform_2, window_bounds = array<i64: 64, 128>}, {transform_indices = @transform_3, window_bounds = array<i64: 1, 1, 128>}, {transform_indices = @transform_4, window_bounds = array<i64: 1, 1, 128>}]} {
    %c0_i32 = arith.constant 0 : i32
    %0 = arith.cmpi eq, %arg1, %c0_i32 : i32
    %1 = arith.extui %0 : i1 to i32
    %c0_i32_0 = arith.constant 0 : i32
    %2 = arith.cmpi ne, %1, %c0_i32_0 : i32
    scf.if %2 {
      %cst_20 = arith.constant 0.000000e+00 : f32
      %25 = vector.broadcast %cst_20 : f32 to vector<1x1x128xf32>
      %c0_21 = arith.constant 0 : index
      %c0_22 = arith.constant 0 : index
      %c0_23 = arith.constant 0 : index
      %26 = vector.load %arg5[%c0_21, %c0_22, %c0_23] : memref<1x1x128xf32, #tpu.memory_space<vmem>>, vector<1x1x128xf32>
      tpu.vector_store %arg5[%c0_21, %c0_22, %c0_23], %25 {strides = array<i32>} : memref<1x1x128xf32, #tpu.memory_space<vmem>>, vector<1x1x128xf32>,
      %cst_24 = arith.constant 0.000000e+00 : f32
      %27 = vector.broadcast %cst_24 : f32 to vector<1x1x128xf32>
      %c0_25 = arith.constant 0 : index
      %c0_26 = arith.constant 0 : index
      %c0_27 = arith.constant 0 : index
      %28 = vector.load %arg6[%c0_25, %c0_26, %c0_27] : memref<1x1x128xf32, #tpu.memory_space<vmem>>, vector<1x1x128xf32>
      tpu.vector_store %arg6[%c0_25, %c0_26, %c0_27], %27 {strides = array<i32>} : memref<1x1x128xf32, #tpu.memory_space<vmem>>, vector<1x1x128xf32>,
    } else {
    }
    %c0 = arith.constant 0 : index
    %c0_1 = arith.constant 0 : index
    %3 = vector.load %arg2[%c0, %c0_1] : memref<64x128xbf16, #tpu.memory_space<vmem>>, vector<64x128xbf16>
    %c0_2 = arith.constant 0 : index
    %c0_3 = arith.constant 0 : index
    %4 = vector.load %arg3[%c0_2, %c0_3] : memref<128x128xbf16, #tpu.memory_space<vmem>>, vector<128x128xbf16>
    %cst = arith.constant dense<0.000000e+00> : vector<64x128xf32>
    %5 = tpu.matmul %3, %4, %cst {dimension_numbers = #tpu.dot_dimension_numbers<[1], [0], [0], [1], [0, 0, 1, 1], [], []>} : vector<64x128xbf16>, vector<128x128xbf16>, vector<64x128xf32> -> vector<64x128xf32>
    %6 = arith.truncf %5 : vector<64x128xf32> to vector<64x128xbf16>
    %c0_4 = arith.constant 0 : index
    %c0_5 = arith.constant 0 : index
    %7 = vector.load %arg4[%c0_4, %c0_5] : memref<64x128xbf16, #tpu.memory_space<vmem>>, vector<64x128xbf16>
    tpu.vector_store %arg4[%c0_4, %c0_5], %6 {strides = array<i32>} : memref<64x128xbf16, #tpu.memory_space<vmem>>, vector<64x128xbf16>,
    %c0_6 = arith.constant 0 : index
    %c0_7 = arith.constant 0 : index
    %c0_8 = arith.constant 0 : index
    %8 = vector.load %arg5[%c0_6, %c0_7, %c0_8] : memref<1x1x128xf32, #tpu.memory_space<vmem>>, vector<1x1x128xf32>
    %9 = vector.shape_cast %8 : vector<1x1x128xf32> to vector<1x128xf32>
    %cst_9 = arith.constant dense<0.000000e+00> : vector<128xf32>
    %10 = vector.multi_reduction <add>, %5, %cst_9 [0] : vector<64x128xf32> to vector<128xf32>
    %11 = vector.shape_cast %10 : vector<128xf32> to vector<1x128xf32>
    %12 = arith.addf %9, %11 : vector<1x128xf32>
    %c0_10 = arith.constant 0 : index
    %c0_11 = arith.constant 0 : index
    %c0_12 = arith.constant 0 : index
    %13 = vector.load %arg5[%c0_10, %c0_11, %c0_12] : memref<1x1x128xf32, #tpu.memory_space<vmem>>, vector<1x1x128xf32>
    %14 = vector.shape_cast %13 : vector<1x1x128xf32> to vector<1x128xf32>
    %15 = vector.shape_cast %12 : vector<1x128xf32> to vector<1x1x128xf32>
    tpu.vector_store %arg5[%c0_10, %c0_11, %c0_12], %15 {strides = array<i32>} : memref<1x1x128xf32, #tpu.memory_space<vmem>>, vector<1x1x128xf32>,
    %c0_13 = arith.constant 0 : index
    %c0_14 = arith.constant 0 : index
    %c0_15 = arith.constant 0 : index
    %16 = vector.load %arg6[%c0_13, %c0_14, %c0_15] : memref<1x1x128xf32, #tpu.memory_space<vmem>>, vector<1x1x128xf32>
    %17 = vector.shape_cast %16 : vector<1x1x128xf32> to vector<1x128xf32>
    %18 = arith.mulf %5, %5 : vector<64x128xf32>
    %cst_16 = arith.constant dense<0.000000e+00> : vector<128xf32>
    %19 = vector.multi_reduction <add>, %18, %cst_16 [0] : vector<64x128xf32> to vector<128xf32>
    %20 = vector.shape_cast %19 : vector<128xf32> to vector<1x128xf32>
    %21 = arith.addf %17, %20 : vector<1x128xf32>
    %c0_17 = arith.constant 0 : index
    %c0_18 = arith.constant 0 : index
    %c0_19 = arith.constant 0 : index
    %22 = vector.load %arg6[%c0_17, %c0_18, %c0_19] : memref<1x1x128xf32, #tpu.memory_space<vmem>>, vector<1x1x128xf32>
    %23 = vector.shape_cast %22 : vector<1x1x128xf32> to vector<1x128xf32>
    %24 = vector.shape_cast %21 : vector<1x128xf32> to vector<1x1x128xf32>
    tpu.vector_store %arg6[%c0_17, %c0_18, %c0_19], %24 {strides = array<i32>} : memref<1x1x128xf32, #tpu.memory_space<vmem>>, vector<1x1x128xf32>,
    return
  }
  func.func @transform_0(%arg0: i32, %arg1: i32) -> (i32, i32) {
    %c1_i32 = arith.constant 1 : i32
    %0 = arith.muli %arg0, %c1_i32 : i32
    %1 = arith.addi %0, %arg1 : i32
    %c0_i32 = arith.constant 0 : i32
    %c0_i32_0 = arith.constant 0 : i32
    return %1, %c0_i32 : i32, i32
  }
  func.func @transform_1(%arg0: i32, %arg1: i32) -> (i32, i32) {
    %c0_i32 = arith.constant 0 : i32
    %c0_i32_0 = arith.constant 0 : i32
    %c0_i32_1 = arith.constant 0 : i32
    return %c0_i32, %c0_i32_0 : i32, i32
  }
  func.func @transform_2(%arg0: i32, %arg1: i32) -> (i32, i32) {
    %c1_i32 = arith.constant 1 : i32
    %0 = arith.muli %arg0, %c1_i32 : i32
    %1 = arith.addi %0, %arg1 : i32
    %c0_i32 = arith.constant 0 : i32
    %c0_i32_0 = arith.constant 0 : i32
    return %1, %c0_i32 : i32, i32
  }
  func.func @transform_3(%arg0: i32, %arg1: i32) -> (i32, i32, i32) {
    %c0_i32 = arith.constant 0 : i32
    %c0_i32_0 = arith.constant 0 : i32
    %c0_i32_1 = arith.constant 0 : i32
    return %arg0, %c0_i32, %c0_i32_0 : i32, i32, i32
  }
  func.func @transform_4(%arg0: i32, %arg1: i32) -> (i32, i32, i32) {
    %c0_i32 = arith.constant 0 : i32
    %c0_i32_0 = arith.constant 0 : i32
    %c0_i32_1 = arith.constant 0 : i32
    return %arg0, %c0_i32, %c0_i32_0 : i32, i32, i32
  }
}

</mosaic_0001>

<llo_original>
// kernel: tpu_custom_call.1
$region0: #{tpu_custom_call.1}
  #allocation0 [shape = 'u32[]', space=smem, size = 0x4, offset = 0x4, fixed_abs, tag = 'smem constant byte address 0x4 - core index']
  #allocation1 [shape = 'u32[144,128]{1,0:T(1,128)}', space=vmem, size = 0x12000, scoped, tag = 'internal scratch']
  %s0 = inlined_call_operand.hbm [shape: bf16[128,128], index: 0, kind: input, shape index: {}]
  %s1 = inlined_call_operand.hbm [shape: bf16[128,128], index: 1, kind: input, shape index: {}]
  %s2 = inlined_call_operand.hbm [shape: bf16[128,128], index: 2, kind: output, shape index: {0}]
  %s3 = inlined_call_operand.hbm [shape: f32[2,1,128], index: 3, kind: output, shape index: {1}]
  %s4 = inlined_call_operand.hbm [shape: f32[2,1,128], index: 4, kind: output, shape index: {2}]
  %5 = xla_tuple %s2, %s3, %s4
  %s6 = sld [smem:[#allocation0]]
  $region69: #{tpu_custom_call.1} parent=0
    _
  %s8 = ssub.s32 1, %s6
  %s9 = scalar_select 0, %s8, %s6
  $region1: #{tpu_custom_call.1} parent=0
    #allocation2 [shape = 'u8[32768]{0}', space=vmem, size = 0x8000, scoped, tag = 'input window, operand 0']
    #allocation3 [shape = 's32[2]{0}', space=sflag, size = 0x8, scoped, tag = 'scoped memory for tpu_custom_call.1']
    #allocation4 [shape = 's32[2]{0}', space=sflag, size = 0x8, scoped, tag = 'scoped memory for tpu_custom_call.1']
    #allocation5 [shape = 'u8[32768]{0}', space=vmem, size = 0x8000, scoped, tag = 'input window, operand 1, single buffered']
    #allocation6 [shape = 's32[1]{0}', space=sflag, size = 0x4, scoped, tag = 'scoped memory for tpu_custom_call.1']
    #allocation7 [shape = 'u8[32768]{0}', space=vmem, size = 0x8000, scoped, tag = 'output window, operand 0']
    #allocation8 [shape = 'u8[1024]{0}', space=vmem, size = 0x400, scoped, tag = 'output window, operand 1']
    #allocation9 [shape = 's32[2]{0}', space=sflag, size = 0x8, scoped, tag = 'scoped memory for tpu_custom_call.1']
    #allocation10 [shape = 'u8[1024]{0}', space=vmem, size = 0x400, scoped, tag = 'output window, operand 2']
    %10 = vsyncpa [#allocation3], 0
    %s11 = scalar_lea.sflag [#allocation3], 1
    %12 = vsyncpa %s11, 0
    %13 = vsyncpa [#allocation6], 0
    %14 = vsyncpa [#allocation4], 0
    %s15 = scalar_lea.sflag [#allocation4], 1
    %16 = vsyncpa %s15, 0
    %17 = vsyncpa [#allocation9], 0
    %s18 = scalar_lea.sflag [#allocation9], 1
    %19 = vsyncpa %s18, 0
    loop: start=0, step=1, limit=4
    $region2: #{tpu_custom_call.1} parent=1 // loop_pre_header
      _
    $region3: #{tpu_custom_call.1} parent=1 // loop_header
      %s21 = sphi 0, %s25
      %p22 = scmp.ge.s32.totalorder %s21, 4
      %s28 = sphi 0, %s40
      %s29 = sphi 0, %s36
      %s30 = sphi 0, %s28
      %s31 = sphi 0, %s29
      %s32 = sphi 0, %s30
      %s33 = sphi 0, %s31
      %s45 = sphi 0, %s47
      %s48 = sphi 0, %s45
      %s49 = sphi 0, %s48
      %s65 = sphi 0, %s49
      %s69 = sphi 0, %s69
      %s71 = sphi 0, %s69
      %s72 = sphi 0, %s71
      %s86 = sphi 0, %s72
      %s94 = sphi 0, %s96
      %s97 = sphi 0, %s94
      %s98 = sphi 0, %s97
      %s114 = sphi 0, %s98
      %s120 = sphi 0, %s122
      %s123 = sphi 0, %s120
      %s124 = sphi 0, %s123
      %s140 = sphi 0, %s124
      %s146 = sphi 0, %s148
      %s149 = sphi 0, %s146
      %s150 = sphi 0, %s149
      %s166 = sphi 0, %s150
    $region4: #{tpu_custom_call.1} parent=1 // loop_header_branch
      %24 = sbr.rel (%p22) target = $region8
    $region5: #{tpu_custom_call.1} parent=1 // loop_body
      %s26 = ssub.s32 %s21, 1
      %s27 = ssub.s32 %s21, 2
      %s34 = sadd.s32 1, %s29
      %p35 = scmp.ge.s32.totalorder %s34, 1
      %s36 = scalar_select %p35, 0, %s34
      %s37 = sadd.s32 1, %s28
      %s38 = scalar_select %p35, %s37, %s28
      %p39 = scmp.ge.s32.totalorder %s38, 2
      %s40 = scalar_select %p39, 0, %s38
      %s41 = sadd.s32 %s28, %s29
      %s42 = sadd.s32 %s40, %s36
      %s43 = ssub.s32 %s41, %s42
      %p44 = scmp.eq.s32.totalorder %s43, 0
      %s46 = sadd.s32 %s45, 1
      %s47 = scalar_select %p44, %s45, %s46
      %p50 = pneg %p44
      %p51 = scmp.eq.s32.totalorder %s21, 1
      %p52 = por %p50, %p51
      %p53 = scmp.ne.s32.totalorder %s45, %s48
      %p54 = scmp.eq.s32.totalorder %s21, 0
      %p55 = por %p53, %p54
      %p56 = scmp.ne.s32.totalorder %s45, %s48
      %p57 = scmp.eq.s32.totalorder %s26, 1
      %p58 = por %p56, %p57
      %p59 = scmp.ne.s32.totalorder %s48, %s49
      %p60 = scmp.eq.s32.totalorder %s26, 0
      %p61 = por %p59, %p60
      %p62 = scmp.ne.s32.totalorder %s48, %s49
      %p63 = scmp.eq.s32.totalorder %s27, 1
      %p64 = por %p62, %p63
      %p66 = scmp.ne.s32.totalorder %s49, %s65
      %p67 = scmp.eq.s32.totalorder %s27, 0
      %p68 = por %p66, %p67
      %s70 = sadd.s32 %s69, 1
      %p73 = scmp.eq.s32.totalorder %s21, 1
      %p74 = scmp.ne.s32.totalorder %s69, %s71
      %p75 = scmp.eq.s32.totalorder %s21, 0
      %p76 = por %p74, %p75
      %p77 = scmp.ne.s32.totalorder %s69, %s71
      %p78 = scmp.eq.s32.totalorder %s26, 1
      %p79 = por %p77, %p78
      %p80 = scmp.ne.s32.totalorder %s71, %s72
      %p81 = scmp.eq.s32.totalorder %s26, 0
      %p82 = por %p80, %p81
      %p83 = scmp.ne.s32.totalorder %s71, %s72
      %p84 = scmp.eq.s32.totalorder %s27, 1
      %p85 = por %p83, %p84
      %p87 = scmp.ne.s32.totalorder %s72, %s86
      %p88 = scmp.eq.s32.totalorder %s27, 0
      %p89 = por %p87, %p88
      %s90 = sadd.s32 %s28, %s29
      %s91 = sadd.s32 %s40, %s36
      %s92 = ssub.s32 %s90, %s91
      %p93 = scmp.eq.s32.totalorder %s92, 0
      %s95 = sadd.s32 %s94, 1
      %s96 = scalar_select %p93, %s94, %s95
      %p99 = pneg %p93
      %p100 = scmp.eq.s32.totalorder %s21, 1
      %p101 = por %p99, %p100
      %p102 = scmp.ne.s32.totalorder %s94, %s97
      %p103 = scmp.eq.s32.totalorder %s21, 0
      %p104 = por %p102, %p103
      %p105 = scmp.ne.s32.totalorder %s94, %s97
      %p106 = scmp.eq.s32.totalorder %s26, 1
      %p107 = por %p105, %p106
      %p108 = scmp.ne.s32.totalorder %s97, %s98
      %p109 = scmp.eq.s32.totalorder %s26, 0
      %p110 = por %p108, %p109
      %p111 = scmp.ne.s32.totalorder %s97, %s98
      %p112 = scmp.eq.s32.totalorder %s27, 1
      %p113 = por %p111, %p112
      %p115 = scmp.ne.s32.totalorder %s98, %s114
      %p116 = scmp.eq.s32.totalorder %s27, 0
      %p117 = por %p115, %p116
      %s118 = ssub.s32 %s28, %s40
      %p119 = scmp.eq.s32.totalorder %s118, 0
      %s121 = sadd.s32 %s120, 1
      %s122 = scalar_select %p119, %s120, %s121
      %p125 = pneg %p119
      %p126 = scmp.eq.s32.totalorder %s21, 1
      %p127 = por %p125, %p126
      %p128 = scmp.ne.s32.totalorder %s120, %s123
      %p129 = scmp.eq.s32.totalorder %s21, 0
      %p130 = por %p128, %p129
      %p131 = scmp.ne.s32.totalorder %s120, %s123
      %p132 = scmp.eq.s32.totalorder %s26, 1
      %p133 = por %p131, %p132
      %p134 = scmp.ne.s32.totalorder %s123, %s124
      %p135 = scmp.eq.s32.totalorder %s26, 0
      %p136 = por %p134, %p135
      %p137 = scmp.ne.s32.totalorder %s123, %s124
      %p138 = scmp.eq.s32.totalorder %s27, 1
      %p139 = por %p137, %p138
      %p141 = scmp.ne.s32.totalorder %s124, %s140
      %p142 = scmp.eq.s32.totalorder %s27, 0
      %p143 = por %p141, %p142
      %s144 = ssub.s32 %s28, %s40
      %p145 = scmp.eq.s32.totalorder %s144, 0
      %s147 = sadd.s32 %s146, 1
      %s148 = scalar_select %p145, %s146, %s147
      %p151 = pneg %p145
      %p152 = scmp.eq.s32.totalorder %s21, 1
      %p153 = por %p151, %p152
      %p154 = scmp.ne.s32.totalorder %s146, %s149
      %p155 = scmp.eq.s32.totalorder %s21, 0
      %p156 = por %p154, %p155
      %p157 = scmp.ne.s32.totalorder %s146, %s149
      %p158 = scmp.eq.s32.totalorder %s26, 1
      %p159 = por %p157, %p158
      %p160 = scmp.ne.s32.totalorder %s149, %s150
      %p161 = scmp.eq.s32.totalorder %s26, 0
      %p162 = por %p160, %p161
      %p163 = scmp.ne.s32.totalorder %s149, %s150
      %p164 = scmp.eq.s32.totalorder %s27, 1
      %p165 = por %p163, %p164
      %p167 = scmp.ne.s32.totalorder %s150, %s166
      %p168 = scmp.eq.s32.totalorder %s27, 0
      %p169 = por %p167, %p168
      %p170 = scmp.le.s32.totalorder 1, %s21
      %p171 = scmp.lt.s32.totalorder %s21, 3
      %p172 = pnand %p170, %p171
      %p173 = pneg %p172
      // Predicated region
      $region9: #{tpu_custom_call.1} parent=5 // pred_check
        _
      $region10: #{tpu_custom_call.1} parent=5 // pred_check_branch
        %175 = sbr.rel (%p172) target = $region12
      $region11: #{tpu_custom_call.1} parent=5 // pred_region
        %s176 = ssub.s32 %s21, 1
        // Predicated region
        $region13: #{tpu_custom_call.1} parent=11 // pred_check
          %p177 = pneg %p82
        $region14: #{tpu_custom_call.1} parent=11 // pred_check_branch
          %179 = sbr.rel (%p177) target = $region16
        $region15: #{tpu_custom_call.1} parent=11 // pred_region
          %s181 = ssub.s32 1024, 1024
          %182 = vsyncadd [#allocation6], %s181
          %s183 = sshll.u32 [#allocation5], 4
          %s184 = int_to_ptr.vmem [resolvable:$true] %s183
          %189 = dma.hbm_to_vmem [thread:$0]  %s1, 1024, %s184, [#allocation6], 64, 64, 4
        $region16: #{tpu_custom_call.1} parent=11 // pred_fallthru
          _
      $region12: #{tpu_custom_call.1} parent=5 // pred_fallthru
        _
      %p190 = scmp.lt.s32.totalorder %s21, 2
      // Predicated region
      $region17: #{tpu_custom_call.1} parent=5 // pred_check
        %p191 = pneg %p190
      $region18: #{tpu_custom_call.1} parent=5 // pred_check_branch
        %193 = sbr.rel (%p191) target = $region20
      $region19: #{tpu_custom_call.1} parent=5 // pred_region
        // Predicated region
        $region21: #{tpu_custom_call.1} parent=19 // pred_check
          %p194 = pneg %p55
        $region22: #{tpu_custom_call.1} parent=19 // pred_check_branch
          %196 = sbr.rel (%p194) target = $region24
        $region23: #{tpu_custom_call.1} parent=19 // pred_region
          %s197 = sand.u32 %s45, 1
          %s198 = scalar_lea.sflag [#allocation3], %s197
          %s199 = sand.u32 %s45, 1
          %s200 = smul.addr %s199, 32
          %s201 = scalar_lea.vmem [#allocation2], %s200
          %s202 = sadd.s32 %s28, %s29
          %s203 = smul.u32 8, %s202
          %s205 = ssub.s32 512, 512
          %206 = vsyncadd %s198, %s205
          %s207 = smul.addr %s203, 64
          %s208 = scalar_lea.hbm %s0, %s207
          %s209 = sshll.u32 %s201, 4
          %s210 = int_to_ptr.vmem [resolvable:$true] %s209
          %215 = dma.hbm_to_vmem [thread:$0]  %s208, 512, %s210, %s198, 64, 64, 4
        $region24: #{tpu_custom_call.1} parent=19 // pred_fallthru
          _
      $region20: #{tpu_custom_call.1} parent=5 // pred_fallthru
        _
      %p216 = scmp.le.s32.totalorder 1, %s21
      %p217 = scmp.lt.s32.totalorder %s21, 3
      %p218 = pnand %p216, %p217
      %p219 = pneg %p218
      // Predicated region
      $region25: #{tpu_custom_call.1} parent=5 // pred_check
        _
      $region26: #{tpu_custom_call.1} parent=5 // pred_check_branch
        %221 = sbr.rel (%p218) target = $region28
      $region27: #{tpu_custom_call.1} parent=5 // pred_region
        %s222 = ssub.s32 %s21, 1
        %s223 = sand.u32 %s48, 1
        %s224 = scalar_lea.sflag [#allocation3], %s223
        %s225 = sand.u32 %s48, 1
        %s226 = smul.addr %s225, 32
        %s227 = scalar_lea.vmem [#allocation2], %s226
        // Predicated region
        $region29: #{tpu_custom_call.1} parent=27 // pred_check
          %p228 = pneg %p61
        $region30: #{tpu_custom_call.1} parent=27 // pred_check_branch
          %230 = sbr.rel (%p228) target = $region32
        $region31: #{tpu_custom_call.1} parent=27 // pred_region
          %231 = dma.done %s224, 512
        $region32: #{tpu_custom_call.1} parent=27 // pred_fallthru
          _
        // Predicated region
        $region33: #{tpu_custom_call.1} parent=27 // pred_check
          %p232 = pneg %p82
        $region34: #{tpu_custom_call.1} parent=27 // pred_check_branch
          %234 = sbr.rel (%p232) target = $region36
        $region35: #{tpu_custom_call.1} parent=27 // pred_region
          %235 = dma.done [#allocation6], 1024
        $region36: #{tpu_custom_call.1} parent=27 // pred_fallthru
          _
        %s236 = sand.u32 %s48, 1
        %s237 = scalar_lea.sflag [#allocation3], %s236
        %s238 = sand.u32 %s48, 1
        %s239 = smul.addr %s238, 32
        %s240 = scalar_lea.vmem [#allocation2], %s239
        %p241 = pneg %p61
        %p242 = pneg %p58
        %p243 = pneg %p82
        %p244 = pneg %p79
        %p245 = pneg %p110
        %p246 = pneg %p107
        %s247 = sand.u32 %s97, 1
        %s248 = scalar_lea.sflag [#allocation4], %s247
        %s249 = sand.u32 %s97, 1
        %s250 = smul.addr %s249, 32
        %s251 = scalar_lea.vmem [#allocation7], %s250
        %p252 = pneg %p136
        %p253 = pneg %p133
        %s254 = sand.u32 %s26, 1
        %s255 = scalar_lea.sflag [#allocation9], %s254
        %s256 = sand.u32 %s123, 1
        %s257 = scalar_lea.vmem [#allocation8], %s256
        %p258 = pneg %p162
        %p259 = pneg %p159
        %s260 = sand.u32 %s26, 1
        %s261 = scalar_lea.sflag [#allocation9], %s260
        %s262 = sand.u32 %s149, 1
        %s263 = scalar_lea.vmem [#allocation10], %s262
        %s264 = sadd.s32 %s30, %s31
        %s265 = smul.u32 8, %s264
        %s266 = sadd.s32 %s30, %s31
        %s267 = smul.u32 8, %s266
        %p269 = scmp.eq.s32.totalorder %s31, 0
        // Predicated region
        $region37: #{tpu_custom_call.1} parent=27 // pred_check
          %p270 = pneg %p269
        $region38: #{tpu_custom_call.1} parent=27 // pred_check_branch
          %272 = sbr.rel (%p270) target = $region40
        $region39: #{tpu_custom_call.1} parent=27 // pred_region
          %273 = vst [vmem:[%s257] sm:$0x1] 0.0
          %274 = vst [vmem:[%s263] sm:$0x1] 0.0
        $region40: #{tpu_custom_call.1} parent=27 // pred_fallthru
          _
        %v275 = vld [vmem:[%s227] sm:$0xf]
        %v276 = vld [vmem:[%s227 + $0x4] sm:$0xf]
        %v277 = vld [vmem:[%s227 + $0x8] sm:$0xf]
        %v278 = vld [vmem:[%s227 + $0xc] sm:$0xf]
        %v279 = vld [vmem:[%s227 + $0x10] sm:$0xf]
        %v280 = vld [vmem:[%s227 + $0x14] sm:$0xf]
        %v281 = vld [vmem:[%s227 + $0x18] sm:$0xf]
        %v282 = vld [vmem:[%s227 + $0x1c] sm:$0xf]
        %v283 = vld [vmem:[#allocation5] sm:$0xf]
        %v284 = vld [vmem:[#allocation5 + $0x4] sm:$0xf]
        %v285 = vld [vmem:[#allocation5 + $0x8] sm:$0xf]
        %v286 = vld [vmem:[#allocation5 + $0xc] sm:$0xf]
        %v287 = vld [vmem:[#allocation5 + $0x10] sm:$0xf]
        %v288 = vld [vmem:[#allocation5 + $0x14] sm:$0xf]
        %v289 = vld [vmem:[#allocation5 + $0x18] sm:$0xf]
        %v290 = vld [vmem:[#allocation5 + $0x1c] sm:$0xf]
        %v291 = vld [vmem:[#allocation5 + $0x20] sm:$0xf]
        %v292 = vld [vmem:[#allocation5 + $0x24] sm:$0xf]
        %v293 = vld [vmem:[#allocation5 + $0x28] sm:$0xf]
        %v294 = vld [vmem:[#allocation5 + $0x2c] sm:$0xf]
        %v295 = vld [vmem:[#allocation5 + $0x30] sm:$0xf]
        %v296 = vld [vmem:[#allocation5 + $0x34] sm:$0xf]
        %v297 = vld [vmem:[#allocation5 + $0x38] sm:$0xf]
        %v298 = vld [vmem:[#allocation5 + $0x3c] sm:$0xf]
        %v307 = vunpack.c.l.b16 %v275
        %v308 = vunpack.c.l.b16 %v276
        %v309 = vunpack.c.l.b16 %v277
        %v310 = vunpack.c.l.b16 %v278
        %v311 = vunpack.c.l.b16 %v279
        %v312 = vunpack.c.l.b16 %v280
        %v313 = vunpack.c.l.b16 %v281
        %v314 = vunpack.c.l.b16 %v282
        %v315 = vpack.c.b16 %v308, %v307
        %v316 = vpack.c.b16 %v310, %v309
        %v317 = vpack.c.b16 %v312, %v311
        %v318 = vpack.c.b16 %v314, %v313
        %v339 = vunpack.c.l.b16 %v283
        %v340 = vunpack.c.l.b16 %v284
        %v341 = vunpack.c.l.b16 %v285
        %v342 = vunpack.c.l.b16 %v286
        %v343 = vunpack.c.l.b16 %v287
        %v344 = vunpack.c.l.b16 %v288
        %v345 = vunpack.c.l.b16 %v289
        %v346 = vunpack.c.l.b16 %v290
        %v347 = vunpack.c.l.b16 %v291
        %v348 = vunpack.c.l.b16 %v292
        %v349 = vunpack.c.l.b16 %v293
        %v350 = vunpack.c.l.b16 %v294
        %v351 = vunpack.c.l.b16 %v295
        %v352 = vunpack.c.l.b16 %v296
        %v353 = vunpack.c.l.b16 %v297
        %v354 = vunpack.c.l.b16 %v298
        %v355 = vpack.c.b16 %v340, %v339
        %v356 = vpack.c.b16 %v342, %v341
        %v357 = vpack.c.b16 %v344, %v343
        %v358 = vpack.c.b16 %v346, %v345
        %v359 = vpack.c.b16 %v348, %v347
        %v360 = vpack.c.b16 %v350, %v349
        %v361 = vpack.c.b16 %v352, %v351
        %v362 = vpack.c.b16 %v354, %v353
        %371 = vmatprep.subr.bf16.mxu0 0
        %372 = vmatpush1.bf16.msra.mxu0 %v362
        %373 = vmatprep.subr.bf16.mxu0 0
        %374 = vmatpush1.bf16.msra.mxu0 %v361
        %375 = vmatprep.subr.bf16.mxu0 0
        %376 = vmatpush1.bf16.msra.mxu0 %v360
        %377 = vmatprep.subr.bf16.mxu0 0
        %378 = vmatpush1.bf16.msra.mxu0 %v359
        %379 = vmatprep.subr.bf16.mxu0 0
        %380 = vmatpush1.bf16.msra.mxu0 %v358
        %381 = vmatprep.subr.bf16.mxu0 0
        %382 = vmatpush1.bf16.msra.mxu0 %v357
        %383 = vmatprep.subr.bf16.mxu0 0
        %384 = vmatpush1.bf16.msra.mxu0 %v356
        %385 = vmatprep.subr.bf16.mxu0 0
        %386 = vmatpush1.bf16.msra.mxu0 %v355
        %387 = vmatprep.subr.bf16.mxu0 0
        %388 = vmatpush2.bf16.msra.mxu0 0
        %389 = vmatprep.subr.bf16.mxu0 0
        %390 = vmatpush2.bf16.msra.mxu0 0
        %391 = vmatprep.subr.bf16.mxu0 0
        %392 = vmatpush2.bf16.msra.mxu0 0
        %393 = vmatprep.subr.bf16.mxu0 0
        %394 = vmatpush2.bf16.msra.mxu0 0
        %395 = vmatprep.subr.bf16.mxu0 0
        %396 = vmatpush2.bf16.msra.mxu0 0
        %397 = vmatprep.subr.bf16.mxu0 0
        %398 = vmatpush2.bf16.msra.mxu0 0
        %399 = vmatprep.subr.bf16.mxu0 0
        %400 = vmatpush2.bf16.msra.mxu0 0
        %401 = vmatprep.subr.bf16.mxu0 0
        %402 = vmatpush2.bf16.msra.mxu0 0
        %403 = vmatprep.mubr.bf16.mxu0 0
        %404 = vmatmul.mubr.bf16.gmra.mxu0 %v315
        %v405 = vpop.f32.mrf.mxu0
        %v406 = vadd.f32 0.0, %v405
        %v407 = vpop.f32.mrf.mxu0
        %v408 = vpop.f32.mrf.mxu0
        %v409 = vadd.f32 0.0, %v408
        %v410 = vpop.f32.mrf.mxu0
        %411 = vmatprep.mubr.bf16.mxu0 0
        %412 = vmatmul.mubr.bf16.gmra.mxu0 %v316
        %v413 = vpop.f32.mrf.mxu0
        %v414 = vadd.f32 0.0, %v413
        %v415 = vpop.f32.mrf.mxu0
        %v416 = vpop.f32.mrf.mxu0
        %v417 = vadd.f32 0.0, %v416
        %v418 = vpop.f32.mrf.mxu0
        %419 = vmatprep.mubr.bf16.mxu0 0
        %420 = vmatmul.mubr.bf16.gmra.mxu0 %v317
        %v421 = vpop.f32.mrf.mxu0
        %v422 = vadd.f32 0.0, %v421
        %v423 = vpop.f32.mrf.mxu0
        %v424 = vpop.f32.mrf.mxu0
        %v425 = vadd.f32 0.0, %v424
        %v426 = vpop.f32.mrf.mxu0
        %427 = vmatprep.mubr.bf16.mxu0 0
        %428 = vmatmul.mubr.bf16.gmra.mxu0 %v318
        %v429 = vpop.f32.mrf.mxu0
        %v430 = vadd.f32 0.0, %v429
        %v431 = vpop.f32.mrf.mxu0
        %v432 = vpop.f32.mrf.mxu0
        %v433 = vadd.f32 0.0, %v432
        %v434 = vpop.f32.mrf.mxu0
        %435 = vdwg.mxu0
        %v436 = vpack.c.bf16 %v409, %v406
        %v437 = vpack.c.bf16 %v417, %v414
        %v438 = vpack.c.bf16 %v425, %v422
        %v439 = vpack.c.bf16 %v433, %v430
        %v444 = vunpack.c.l.b16 %v436
        %v445 = vunpack.c.h.b16 %v436
        %v446 = vunpack.c.l.b16 %v437
        %v447 = vunpack.c.h.b16 %v437
        %v448 = vunpack.c.l.b16 %v438
        %v449 = vunpack.c.h.b16 %v438
        %v450 = vunpack.c.l.b16 %v439
        %v451 = vunpack.c.h.b16 %v439
        %v452 = vpack.c.b16 %v444, %v444
        %v453 = vpack.c.b16 %v445, %v445
        %v454 = vpack.c.b16 %v446, %v446
        %v455 = vpack.c.b16 %v447, %v447
        %v456 = vpack.c.b16 %v448, %v448
        %v457 = vpack.c.b16 %v449, %v449
        %v458 = vpack.c.b16 %v450, %v450
        %v459 = vpack.c.b16 %v451, %v451
        %468 = vst [vmem:[%s251] sm:$0xf] %v452
        %469 = vst [vmem:[%s251 + $0x4] sm:$0xf] %v453
        %470 = vst [vmem:[%s251 + $0x8] sm:$0xf] %v454
        %471 = vst [vmem:[%s251 + $0xc] sm:$0xf] %v455
        %472 = vst [vmem:[%s251 + $0x10] sm:$0xf] %v456
        %473 = vst [vmem:[%s251 + $0x14] sm:$0xf] %v457
        %474 = vst [vmem:[%s251 + $0x18] sm:$0xf] %v458
        %475 = vst [vmem:[%s251 + $0x1c] sm:$0xf] %v459
        %v476 = vld [vmem:[%s257] sm:$0x1]
        %v477 = vadd.f32 %v406, %v409
        %v478 = vadd.f32 %v477, %v414
        %v479 = vadd.f32 %v478, %v417
        %v480 = vadd.f32 %v479, %v422
        %v481 = vadd.f32 %v480, %v425
        %v482 = vadd.f32 %v481, %v430
        %v483 = vadd.f32 %v482, %v433
        %v484 = vrot.slane %v483, 4
        %v485 = vadd.f32 %v483, %v484
        %v486 = vrot.slane %v485, 2
        %v487 = vadd.f32 %v485, %v486
        %v488 = vrot.slane %v487, 1
        %v489 = vadd.f32 %v487, %v488
        %v490 = vadd.f32 %v476, %v489
        %491 = vst [vmem:[%s257] sm:$0x1] %v490
        %v492 = vld [vmem:[%s263] sm:$0x1]
        %v493 = vmul.f32 %v406, %v406
        %v494 = vmul.f32 %v409, %v409
        %v495 = vmul.f32 %v414, %v414
        %v496 = vmul.f32 %v417, %v417
        %v497 = vmul.f32 %v422, %v422
        %v498 = vmul.f32 %v425, %v425
        %v499 = vmul.f32 %v430, %v430
        %v500 = vmul.f32 %v433, %v433
        %v501 = vadd.f32 %v493, %v494
        %v502 = vadd.f32 %v501, %v495
        %v503 = vadd.f32 %v502, %v496
        %v504 = vadd.f32 %v503, %v497
        %v505 = vadd.f32 %v504, %v498
        %v506 = vadd.f32 %v505, %v499
        %v507 = vadd.f32 %v506, %v500
        %v508 = vrot.slane %v507, 4
        %v509 = vadd.f32 %v507, %v508
        %v510 = vrot.slane %v509, 2
        %v511 = vadd.f32 %v509, %v510
        %v512 = vrot.slane %v511, 1
        %v513 = vadd.f32 %v511, %v512
        %v514 = vadd.f32 %v492, %v513
        %515 = vst [vmem:[%s263] sm:$0x1] %v514
        %s516 = sand.u32 %s97, 1
        %s517 = scalar_lea.sflag [#allocation4], %s516
        %s518 = sand.u32 %s97, 1
        %s519 = smul.addr %s518, 32
        %s520 = scalar_lea.vmem [#allocation7], %s519
        %s521 = sand.u32 %s26, 1
        %s522 = scalar_lea.sflag [#allocation9], %s521
        %s523 = sand.u32 %s123, 1
        %s524 = scalar_lea.vmem [#allocation8], %s523
        %s525 = sand.u32 %s26, 1
        %s526 = scalar_lea.sflag [#allocation9], %s525
        %s527 = sand.u32 %s149, 1
        %s528 = scalar_lea.vmem [#allocation10], %s527
        // Predicated region
        $region41: #{tpu_custom_call.1} parent=27 // pred_check
          %p529 = pneg %p107
        $region42: #{tpu_custom_call.1} parent=27 // pred_check_branch
          %531 = sbr.rel (%p529) target = $region44
        $region43: #{tpu_custom_call.1} parent=27 // pred_region
          %s532 = sadd.s32 %s30, %s31
          %s533 = smul.u32 8, %s532
          %s535 = ssub.s32 512, 512
          %536 = vsyncadd %s517, %s535
          %s537 = smul.addr %s533, 64
          %s538 = scalar_lea.hbm %s2, %s537
          %s539 = sshll.u32 %s520, 4
          %s540 = int_to_ptr.vmem [resolvable:$true] %s539
          %545 = dma.vmem_to_hbm [thread:$0]  %s540, 512, %s538, %s517, 64, 64, 4
        $region44: #{tpu_custom_call.1} parent=27 // pred_fallthru
          _
        // Predicated region
        $region45: #{tpu_custom_call.1} parent=27 // pred_check
          %p546 = pneg %p133
        $region46: #{tpu_custom_call.1} parent=27 // pred_check_branch
          %548 = sbr.rel (%p546) target = $region48
        $region47: #{tpu_custom_call.1} parent=27 // pred_region
          %s550 = ssub.s32 16, 16
          %551 = vsyncadd %s522, %s550
          %s552 = smul.addr %s30, 16
          %s553 = scalar_lea.hbm %s3, %s552
          %s555 = sshll.u32 %s524, 4
          %s556 = int_to_ptr.vmem [resolvable:$true] %s555
          %558 = dma.vmem_to_hbm [thread:$0]  %s556, 16, %s553, %s522
        $region48: #{tpu_custom_call.1} parent=27 // pred_fallthru
          _
        // Predicated region
        $region49: #{tpu_custom_call.1} parent=27 // pred_check
          %p559 = pneg %p159
        $region50: #{tpu_custom_call.1} parent=27 // pred_check_branch
          %561 = sbr.rel (%p559) target = $region52
        $region51: #{tpu_custom_call.1} parent=27 // pred_region
          %s563 = ssub.s32 16, 16
          %564 = vsyncadd %s526, %s563
          %s565 = smul.addr %s30, 16
          %s566 = scalar_lea.hbm %s4, %s565
          %s568 = sshll.u32 %s528, 4
          %s569 = int_to_ptr.vmem [resolvable:$true] %s568
          %571 = dma.vmem_to_hbm [thread:$0]  %s569, 16, %s566, %s526
        $region52: #{tpu_custom_call.1} parent=27 // pred_fallthru
          _
      $region28: #{tpu_custom_call.1} parent=5 // pred_fallthru
        _
      %p572 = scmp.le.s32.totalorder 2, %s21
      // Predicated region
      $region53: #{tpu_custom_call.1} parent=5 // pred_check
        %p573 = pneg %p572
      $region54: #{tpu_custom_call.1} parent=5 // pred_check_branch
        %575 = sbr.rel (%p573) target = $region56
      $region55: #{tpu_custom_call.1} parent=5 // pred_region
        %s576 = ssub.s32 %s21, 2
        // Predicated region
        $region57: #{tpu_custom_call.1} parent=55 // pred_check
          %p577 = pneg %p113
        $region58: #{tpu_custom_call.1} parent=55 // pred_check_branch
          %579 = sbr.rel (%p577) target = $region60
        $region59: #{tpu_custom_call.1} parent=55 // pred_region
          %s580 = sand.u32 %s98, 1
          %s581 = scalar_lea.sflag [#allocation4], %s580
          %s582 = sand.u32 %s98, 1
          %s583 = smul.addr %s582, 32
          %s584 = scalar_lea.vmem [#allocation7], %s583
          %585 = dma.done %s581, 512
        $region60: #{tpu_custom_call.1} parent=55 // pred_fallthru
          _
        // Predicated region
        $region61: #{tpu_custom_call.1} parent=55 // pred_check
          %p586 = pneg %p139
        $region62: #{tpu_custom_call.1} parent=55 // pred_check_branch
          %588 = sbr.rel (%p586) target = $region64
        $region63: #{tpu_custom_call.1} parent=55 // pred_region
          %s589 = sand.u32 %s27, 1
          %s590 = scalar_lea.sflag [#allocation9], %s589
          %s591 = sand.u32 %s124, 1
          %s592 = scalar_lea.vmem [#allocation8], %s591
          %593 = dma.done %s590, 16
        $region64: #{tpu_custom_call.1} parent=55 // pred_fallthru
          _
        // Predicated region
        $region65: #{tpu_custom_call.1} parent=55 // pred_check
          %p594 = pneg %p165
        $region66: #{tpu_custom_call.1} parent=55 // pred_check_branch
          %596 = sbr.rel (%p594) target = $region68
        $region67: #{tpu_custom_call.1} parent=55 // pred_region
          %s597 = sand.u32 %s27, 1
          %s598 = scalar_lea.sflag [#allocation9], %s597
          %s599 = sand.u32 %s150, 1
          %s600 = scalar_lea.vmem [#allocation10], %s599
          %601 = dma.done %s598, 16
        $region68: #{tpu_custom_call.1} parent=55 // pred_fallthru
          _
      $region56: #{tpu_custom_call.1} parent=5 // pred_fallthru
        _
    $region6: #{tpu_custom_call.1} parent=1 // loop_footer
      %s25 = sadd.s32 1, %s21
    $region7: #{tpu_custom_call.1} parent=1 // loop_footer_branch
      %20 = sbr.rel target = $region3
    $region8: #{tpu_custom_call.1} parent=1 // loop_exit
      _
    %602 = vsyncpa [#allocation3], 1
    %s603 = scalar_lea.sflag [#allocation3], 1
    %604 = vsyncpa %s603, 1
    %605 = vsyncpa [#allocation6], 1
    %606 = vsyncpa [#allocation4], 1
    %s607 = scalar_lea.sflag [#allocation4], 1
    %608 = vsyncpa %s607, 1
    %609 = vsyncpa [#allocation9], 1
    %s610 = scalar_lea.sflag [#allocation9], 1
    %611 = vsyncpa %s610, 1

</llo_original>
